<compile_context>
chip_gen: v7x
topology: tpu7x:2x2x1
jax: 0.10.0
libtpu: 0.0.40
codegen_flags: <defaults>
</compile_context>

<pallas_src>
import math
from functools import partial

import jax
import jax.numpy as jnp
from jax import lax
from jax.experimental import pallas as pl
from jax.experimental.pallas import tpu as pltpu

LANES = 128


def _mu_l1_sum_jnp(p, l, mu, inv_log_mu):
    """Tiny jnp fallback: sum of |mu-law(p) - mu-law(l)| (no mean)."""
    p = p.astype(jnp.float32)
    l = l.astype(jnp.float32)
    return jnp.sum(jnp.abs(jnp.log1p(mu * p) - jnp.log1p(mu * l))) * jnp.float32(inv_log_mu)


def _vmem_budget():
    """(tile bytes per input per pipeline buffer, vmem_limit_bytes), generation-aware."""
    try:
        cap = int(pltpu.get_tpu_info().vmem_capacity_bytes)
    except Exception:
        cap = 64 * 1024 * 1024          # conservative fallback (v7x-sized VMEM)
    if cap > (64 << 20):                # v5e / v6e: 128 MiB physical VMEM
        return (8 << 20), (96 << 20)
    return (4 << 20), (48 << 20)        # v7x: 64 MiB physical VMEM


def _l1mu_kernel(pred_ref, label_ref, out_ref, acc_ref, *,
                 mu, inv_log_mu, tile_rows, tiles_per_core, valid_rows,
                 needs_mask, wide_acc):
    c = pl.program_id(0)   # core-split axis ("parallel")
    i = pl.program_id(1)   # row-tile within this core's slice ("arbitrary")

    @pl.when(i == 0)
    def _init():
        acc_ref[...] = jnp.zeros_like(acc_ref)

    # mu-law range compression + |difference| in f32 on vregs.
    # Single EUP log per element: |log(1+mu p) - log(1+mu l)| = |log((1+mu p)/(1+mu l))|.
    p = pred_ref[...].astype(jnp.float32)
    l = label_ref[...].astype(jnp.float32)
    d = jnp.abs(jnp.log((1.0 + mu * p) / (1.0 + mu * l))) * inv_log_mu

    def _accumulate(vals):
        if wide_acc:
            # (tile_rows,128) -> (tile_rows//8, 8, 128) is a no-op re-tiling; the
            # axis-0 sum is pure vreg adds (no per-step XLU sublane collapse).
            acc_ref[...] += jnp.sum(vals.reshape(tile_rows // 8, 8, LANES), axis=0)
        else:
            # Tiny-input fallback (tile_rows == rows, not a multiple of 8).
            acc_ref[0:1, :] += jnp.sum(vals, axis=0, keepdims=True)

    if needs_mask:
        # Only the last (partial) real tile and any clamped duplicate tile take
        # the masked path; every fully-valid tile takes the unmasked fast path.
        tile_idx = c * tiles_per_core + i
        is_partial = (tile_idx + 1) * tile_rows > valid_rows

        @pl.when(jnp.logical_not(is_partial))
        def _fast():
            _accumulate(d)

        @pl.when(is_partial)
        def _masked():
            row_ids = tile_idx * tile_rows + lax.broadcasted_iota(
                jnp.int32, (tile_rows, 1), 0)
            _accumulate(jnp.where(row_ids < valid_rows, d, 0.0))
    else:
        _accumulate(d)

    @pl.when(i == pl.num_programs(1) - 1)
    def _finalize():
        out_ref[...] = acc_ref[...]     # single unmasked (8,128) store


def l1_mu_loss(pred, label, mu=5000.0, *, max_tile_rows=None):
    """Mean L1 loss between mu-law range-compressed pred and label (scalar).

    Matches nn.L1Loss()(log(1+mu*pred)/log(1+mu), log(1+mu*label)/log(1+mu)).
    Inputs are assumed non-negative (HDR images), as in the PyTorch module.
    """
    assert pred.shape == label.shape, (pred.shape, label.shape)
    assert pred.dtype == label.dtype, (pred.dtype, label.dtype)

    n = pred.size
    mu = float(mu)
    inv_log_mu = 1.0 / math.log(1.0 + mu)

    pred_f = jnp.ravel(pred)
    label_f = jnp.ravel(label)

    rows = n // LANES
    n_main = rows * LANES
    tail_n = n - n_main

    # <=127-element tail handled with a tiny jnp expression instead of padding
    # (and re-reading) full copies of both inputs.
    tail_sum = jnp.float32(0.0)
    if tail_n:
        tail_sum = _mu_l1_sum_jnp(pred_f[n_main:], label_f[n_main:], mu, inv_log_mu)

    if rows == 0:
        return tail_sum / jnp.float32(n)

    if tail_n:
        # Lane-aligned prefix (offset-0 contiguous slice; unlike jnp.pad it never
        # writes or re-reads a padded copy larger than the input).
        pred_2d = pred_f[:n_main].reshape(rows, LANES)
        label_2d = label_f[:n_main].reshape(rows, LANES)
    else:
        pred_2d = pred_f.reshape(rows, LANES)      # free bitcast
        label_2d = label_f.reshape(rows, LANES)

    # --- tile sizing: ~4 MiB (v7x) / ~8 MiB (v5e,v6e) per input per buffer ----
    itemsize = jnp.dtype(pred.dtype).itemsize
    tile_budget_bytes, vmem_limit_bytes = _vmem_budget()
    tile_rows_cap = max(8, (tile_budget_bytes // (LANES * itemsize)) // 8 * 8)
    if max_tile_rows is not None:                  # test hook
        tile_rows_cap = max(8, (int(max_tile_rows) // 8) * 8)

    if rows <= tile_rows_cap:
        tile_rows = rows               # block == full array dim -> always legal
    else:
        tile_rows = tile_rows_cap      # multiple of 8
    tiles_total = pl.cdiv(rows, tile_rows)

    # 2-way core split only when there is real work to split (v7x's 2 TCs); on
    # 1-TC chips the extra axis is a serial loop, and a clamped duplicate tile
    # keeps the same block index so it is not re-fetched from HBM.
    num_splits = 2 if tiles_total >= 2 else 1
    tiles_per_core = pl.cdiv(tiles_total, num_splits)

    needs_mask = (rows % tile_rows != 0) or (num_splits * tiles_per_core != tiles_total)
    wide_acc = (tile_rows % 8 == 0)

    def in_index_map(c, i):
        # Clamp so an over-split core never issues an out-of-bounds DMA; the
        # duplicate tile is fully zeroed by the in-kernel row mask.
        return (jnp.minimum(c * tiles_per_core + i, tiles_total - 1), 0)

    kernel = partial(
        _l1mu_kernel,
        mu=mu, inv_log_mu=inv_log_mu,
        tile_rows=tile_rows, tiles_per_core=tiles_per_core, valid_rows=rows,
        needs_mask=needs_mask, wide_acc=wide_acc,
    )

    out_rows = num_splits * 8
    cost = pl.CostEstimate(
        flops=8 * n_main,
        transcendentals=n_main,
        bytes_accessed=2 * n_main * itemsize + out_rows * LANES * 4,
    )

    partials = pl.pallas_call(
        kernel,
        out_shape=jax.ShapeDtypeStruct((out_rows, LANES), jnp.float32),
        grid_spec=pltpu.PrefetchScalarGridSpec(
            num_scalar_prefetch=0,
            grid=(num_splits, tiles_per_core),
            in_specs=[
                pl.BlockSpec((tile_rows, LANES), in_index_map),
                pl.BlockSpec((tile_rows, LANES), in_index_map),
            ],
            out_specs=pl.BlockSpec((8, LANES), lambda c, i: (c, 0)),
            scratch_shapes=[pltpu.VMEM((8, LANES), jnp.float32)],
        ),
        compiler_params=pltpu.CompilerParams(
            dimension_semantics=("parallel", "arbitrary"),
            vmem_limit_bytes=vmem_limit_bytes,
        ),
        cost_estimate=cost,
    )(pred_2d, label_2d)

    return (jnp.sum(partials) + tail_sum) / jnp.float32(n)


def _ref_loss(pred, label, mu=5000.0):
    inv = 1.0 / math.log(1.0 + mu)
    p = pred.astype(jnp.float32)
    l = label.astype(jnp.float32)
    return jnp.mean(jnp.abs(jnp.log(1.0 + mu * p) * inv - jnp.log(1.0 + mu * l) * inv))


if __name__ == "__main__":
    key = jax.random.PRNGKey(0)
    k1, k2, k3, k4, k5, k6 = jax.random.split(key, 6)

    # NCHW, small HDR-ish non-negative images (module's intended use).
    shape = (2, 4, 16, 16)                         # 2048 elems -> single tile
    pred = jax.random.uniform(k1, shape, dtype=jnp.float32)
    label = jax.random.uniform(k2, shape, dtype=jnp.float32)

    loss = l1_mu_loss(pred, label)
    jax.block_until_ready(loss)
    ref = _ref_loss(pred, label)
    assert jnp.allclose(loss, ref, rtol=1e-5, atol=1e-6), (loss, ref)

    # Non-default mu (mu is threaded through to the kernel constants).
    loss_mu = l1_mu_loss(pred, label, mu=100.0)
    ref_mu = _ref_loss(pred, label, mu=100.0)
    assert jnp.allclose(loss_mu, ref_mu, rtol=1e-5, atol=1e-6), (loss_mu, ref_mu)

    # Non-lane-aligned shape: kernel on the 128-aligned prefix + jnp tail.
    shape2 = (1, 3, 17, 19)                        # 969 elems
    pred2 = jax.random.uniform(k3, shape2, dtype=jnp.float32)
    label2 = jax.random.uniform(k4, shape2, dtype=jnp.float32)
    loss2 = l1_mu_loss(pred2, label2)
    ref2 = _ref_loss(pred2, label2)
    assert jnp.allclose(loss2, ref2, rtol=1e-5, atol=1e-6), (loss2, ref2)

    # Multi-tile + 2-way core split + partial last tile + clamped duplicate tile
    # (tiles forced small to exercise the gated-mask path at small sizes).
    shape3 = (1, 5, 16, 32)                        # 2560 elems -> 20 rows
    pred3 = jax.random.uniform(k5, shape3, dtype=jnp.float32)
    label3 = jax.random.uniform(k6, shape3, dtype=jnp.float32)
    loss3 = l1_mu_loss(pred3, label3, max_tile_rows=8)
    ref3 = _ref_loss(pred3, label3)
    assert jnp.allclose(loss3, ref3, rtol=1e-5, atol=1e-6), (loss3, ref3)

    # bf16 inputs (post-load upcast; only 2 B/element streamed from HBM).
    loss4 = l1_mu_loss(pred.astype(jnp.bfloat16), label.astype(jnp.bfloat16))
    ref4 = _ref_loss(pred.astype(jnp.bfloat16), label.astype(jnp.bfloat16))
    assert jnp.allclose(loss4, ref4, rtol=1e-5, atol=1e-5), (loss4, ref4)

    jax.block_until_ready((loss, loss_mu, loss2, loss3, loss4))
    print("KERNEL_OK")
</pallas_src>

<mosaic_0001>
module attributes {stable_mosaic.version = 11 : i64} {
  func.func @_l1mu_kernel(%arg0: i32, %arg1: i32, %arg2: memref<16x128xf32, #tpu.memory_space<vmem>>, %arg3: memref<16x128xf32, #tpu.memory_space<vmem>>, %arg4: memref<8x128xf32, #tpu.memory_space<vmem>>, %arg5: memref<8x128xf32, #tpu.memory_space<vmem>>) attributes {dimension_semantics = [#tpu.dimension_semantics<parallel>, #tpu.dimension_semantics<arbitrary>], iteration_bounds = array<i64: 1, 1>, scalar_prefetch = 0 : i64, scratch_operands = 1 : i64, tpu.core_type = #tpu.core_type<tc>, window_params = [{transform_indices = @transform_0, window_bounds = array<i64: 16, 128>}, {transform_indices = @transform_1, window_bounds = array<i64: 16, 128>}, {transform_indices = @transform_2, window_bounds = array<i64: 8, 128>}]} {
    %c0_i32 = arith.constant 0 : i32
    %0 = arith.cmpi eq, %arg1, %c0_i32 : i32
    %1 = arith.extui %0 : i1 to i32
    %c0_i32_0 = arith.constant 0 : i32
    %2 = arith.cmpi ne, %1, %c0_i32_0 : i32
    scf.if %2 {
      %cst_15 = arith.constant 0.000000e+00 : f32
      %26 = vector.broadcast %cst_15 : f32 to vector<8x128xf32>
      %c0_16 = arith.constant 0 : index
      %c0_17 = arith.constant 0 : index
      %27 = vector.load %arg5[%c0_16, %c0_17] : memref<8x128xf32, #tpu.memory_space<vmem>>, vector<8x128xf32>
      tpu.vector_store %arg5[%c0_16, %c0_17], %26 {strides = array<i32>} : memref<8x128xf32, #tpu.memory_space<vmem>>, vector<8x128xf32>,
    } else {
    }
    %c0 = arith.constant 0 : index
    %c0_1 = arith.constant 0 : index
    %3 = vector.load %arg2[%c0, %c0_1] : memref<16x128xf32, #tpu.memory_space<vmem>>, vector<16x128xf32>
    %c0_2 = arith.constant 0 : index
    %c0_3 = arith.constant 0 : index
    %4 = vector.load %arg3[%c0_2, %c0_3] : memref<16x128xf32, #tpu.memory_space<vmem>>, vector<16x128xf32>
    %cst = arith.constant 5.000000e+03 : f32
    %5 = vector.broadcast %cst : f32 to vector<16x128xf32>
    %6 = arith.mulf %5, %3 : vector<16x128xf32>
    %cst_4 = arith.constant 1.000000e+00 : f32
    %7 = vector.broadcast %cst_4 : f32 to vector<16x128xf32>
    %8 = arith.addf %7, %6 : vector<16x128xf32>
    %cst_5 = arith.constant 5.000000e+03 : f32
    %9 = vector.broadcast %cst_5 : f32 to vector<16x128xf32>
    %10 = arith.mulf %9, %4 : vector<16x128xf32>
    %cst_6 = arith.constant 1.000000e+00 : f32
    %11 = vector.broadcast %cst_6 : f32 to vector<16x128xf32>
    %12 = arith.addf %11, %10 : vector<16x128xf32>
    %13 = arith.divf %8, %12 : vector<16x128xf32>
    %14 = math.log %13 : vector<16x128xf32>
    %15 = math.absf %14 : vector<16x128xf32>
    %cst_7 = arith.constant 0.117406815 : f32
    %16 = vector.broadcast %cst_7 : f32 to vector<16x128xf32>
    %17 = arith.mulf %15, %16 : vector<16x128xf32>
    %c0_8 = arith.constant 0 : index
    %c0_9 = arith.constant 0 : index
    %18 = vector.load %arg5[%c0_8, %c0_9] : memref<8x128xf32, #tpu.memory_space<vmem>>, vector<8x128xf32>
    %19 = vector.shape_cast %17 : vector<16x128xf32> to vector<2x8x128xf32>
    %cst_10 = arith.constant dense<0.000000e+00> : vector<8x128xf32>
    %20 = vector.multi_reduction <add>, %19, %cst_10 [0] : vector<2x8x128xf32> to vector<8x128xf32>
    %21 = arith.addf %18, %20 : vector<8x128xf32>
    %c0_11 = arith.constant 0 : index
    %c0_12 = arith.constant 0 : index
    %22 = vector.load %arg5[%c0_11, %c0_12] : memref<8x128xf32, #tpu.memory_space<vmem>>, vector<8x128xf32>
    tpu.vector_store %arg5[%c0_11, %c0_12], %21 {strides = array<i32>} : memref<8x128xf32, #tpu.memory_space<vmem>>, vector<8x128xf32>,
    %c0_i32_13 = arith.constant 0 : i32
    %23 = arith.cmpi eq, %arg1, %c0_i32_13 : i32
    %24 = arith.extui %23 : i1 to i32
    %c0_i32_14 = arith.constant 0 : i32
    %25 = arith.cmpi ne, %24, %c0_i32_14 : i32
    scf.if %25 {
      %c0_15 = arith.constant 0 : index
      %c0_16 = arith.constant 0 : index
      %26 = vector.load %arg5[%c0_15, %c0_16] : memref<8x128xf32, #tpu.memory_space<vmem>>, vector<8x128xf32>
      %c0_17 = arith.constant 0 : index
      %c0_18 = arith.constant 0 : index
      %27 = vector.load %arg4[%c0_17, %c0_18] : memref<8x128xf32, #tpu.memory_space<vmem>>, vector<8x128xf32>
      tpu.vector_store %arg4[%c0_17, %c0_18], %26 {strides = array<i32>} : memref<8x128xf32, #tpu.memory_space<vmem>>, vector<8x128xf32>,
    } else {
    }
    return
  }
  func.func @transform_0(%arg0: i32, %arg1: i32) -> (i32, i32) {
    %c1_i32 = arith.constant 1 : i32
    %0 = arith.muli %arg0, %c1_i32 : i32
    %1 = arith.addi %0, %arg1 : i32
    %c0_i32 = arith.constant 0 : i32
    %2 = arith.minsi %1, %c0_i32 : i32
    %c0_i32_0 = arith.constant 0 : i32
    %c0_i32_1 = arith.constant 0 : i32
    return %2, %c0_i32_0 : i32, i32
  }
  func.func @transform_1(%arg0: i32, %arg1: i32) -> (i32, i32) {
    %c1_i32 = arith.constant 1 : i32
    %0 = arith.muli %arg0, %c1_i32 : i32
    %1 = arith.addi %0, %arg1 : i32
    %c0_i32 = arith.constant 0 : i32
    %2 = arith.minsi %1, %c0_i32 : i32
    %c0_i32_0 = arith.constant 0 : i32
    %c0_i32_1 = arith.constant 0 : i32
    return %2, %c0_i32_0 : i32, i32
  }
  func.func @transform_2(%arg0: i32, %arg1: i32) -> (i32, i32) {
    %c0_i32 = arith.constant 0 : i32
    %c0_i32_0 = arith.constant 0 : i32
    return %arg0, %c0_i32 : i32, i32
  }
}

</mosaic_0001>

<llo_original>
// kernel: tpu_custom_call.1
$region0: #{tpu_custom_call.1}
  #allocation0 [shape = 'u32[]', space=smem, size = 0x4, offset = 0x4, fixed_abs, tag = 'smem constant byte address 0x4 - core index']
  #allocation1 [shape = 'u32[144,128]{1,0:T(1,128)}', space=vmem, size = 0x12000, scoped, tag = 'internal scratch']
  #allocation2 [shape = 'f32[8,128]{1,0:T(8,128)}', space=vmem, size = 0x1000, scoped, tag = 'scratch operand']
  %s0 = inlined_call_operand.hbm [shape: f32[16,128], index: 0, kind: input, shape index: {}]
  %s1 = inlined_call_operand.hbm [shape: f32[16,128], index: 1, kind: input, shape index: {}]
  %s2 = inlined_call_operand.hbm [shape: f32[8,128], index: 2, kind: output, shape index: {}]
  %s3 = sld [smem:[#allocation0]]
  $region34: #{tpu_custom_call.1} parent=0
    _
  %s5 = ssub.s32 1, %s3
  %s6 = scalar_select 0, %s5, %s3
  $region1: #{tpu_custom_call.1} parent=0
    #allocation3 [shape = 'u8[8192]{0}', space=vmem, size = 0x2000, scoped, tag = 'input window, operand 0, single buffered']
    #allocation4 [shape = 's32[1]{0}', space=sflag, size = 0x4, scoped, tag = 'scoped memory for tpu_custom_call.1']
    #allocation5 [shape = 's32[1]{0}', space=sflag, size = 0x4, scoped, tag = 'scoped memory for tpu_custom_call.1']
    #allocation6 [shape = 'u8[8192]{0}', space=vmem, size = 0x2000, scoped, tag = 'input window, operand 1, single buffered']
    #allocation7 [shape = 's32[1]{0}', space=sflag, size = 0x4, scoped, tag = 'scoped memory for tpu_custom_call.1']
    #allocation8 [shape = 'u8[4096]{0}', space=vmem, size = 0x1000, scoped, tag = 'output window, operand 0, single buffered']
    %7 = vsyncpa [#allocation4], 0
    %8 = vsyncpa [#allocation7], 0
    %9 = vsyncpa [#allocation5], 0
    // Predicated region
    $region2: #{tpu_custom_call.1} parent=1 // pred_check
      _
    $region3: #{tpu_custom_call.1} parent=1 // pred_check_branch
      %11 = sbr.rel (0) target = $region5
    $region4: #{tpu_custom_call.1} parent=1 // pred_region
      %s12 = sadd.s32 0, 0
      %p13 = scmp.lt.s32.totalorder %s12, 0
      %s14 = scalar_select %p13, %s12, 0
      %s15 = smul.u32 2, %s14
      %s17 = ssub.s32 256, 256
      %18 = vsyncadd [#allocation4], %s17
      %s19 = smul.addr %s15, 128
      %s20 = scalar_lea.hbm %s0, %s19
      %s21 = sshll.u32 [#allocation3], 4
      %s22 = int_to_ptr.vmem [resolvable:$true] %s21
      %27 = dma.hbm_to_vmem [thread:$0]  %s20, 256, %s22, [#allocation4], 128, 128, 8
    $region5: #{tpu_custom_call.1} parent=1 // pred_fallthru
      _
    // Predicated region
    $region6: #{tpu_custom_call.1} parent=1 // pred_check
      _
    $region7: #{tpu_custom_call.1} parent=1 // pred_check_branch
      %29 = sbr.rel (0) target = $region9
    $region8: #{tpu_custom_call.1} parent=1 // pred_region
      %s30 = sadd.s32 0, 0
      %p31 = scmp.lt.s32.totalorder %s30, 0
      %s32 = scalar_select %p31, %s30, 0
      %s33 = smul.u32 2, %s32
      %s35 = ssub.s32 256, 256
      %36 = vsyncadd [#allocation7], %s35
      %s37 = smul.addr %s33, 128
      %s38 = scalar_lea.hbm %s1, %s37
      %s39 = sshll.u32 [#allocation6], 4
      %s40 = int_to_ptr.vmem [resolvable:$true] %s39
      %45 = dma.hbm_to_vmem [thread:$0]  %s38, 256, %s40, [#allocation7], 128, 128, 8
    $region9: #{tpu_custom_call.1} parent=1 // pred_fallthru
      _
    // Predicated region
    $region10: #{tpu_custom_call.1} parent=1 // pred_check
      _
    $region11: #{tpu_custom_call.1} parent=1 // pred_check_branch
      %47 = sbr.rel (0) target = $region13
    $region12: #{tpu_custom_call.1} parent=1 // pred_region
      %48 = dma.done [#allocation4], 256
    $region13: #{tpu_custom_call.1} parent=1 // pred_fallthru
      _
    // Predicated region
    $region14: #{tpu_custom_call.1} parent=1 // pred_check
      _
    $region15: #{tpu_custom_call.1} parent=1 // pred_check_branch
      %50 = sbr.rel (0) target = $region17
    $region16: #{tpu_custom_call.1} parent=1 // pred_region
      %51 = dma.done [#allocation7], 256
    $region17: #{tpu_custom_call.1} parent=1 // pred_fallthru
      _
    %s52 = sadd.s32 0, 0
    %p53 = scmp.lt.s32.totalorder %s52, 0
    %s54 = scalar_select %p53, %s52, 0
    %s55 = smul.u32 2, %s54
    %s56 = sadd.s32 0, 0
    %p57 = scmp.lt.s32.totalorder %s56, 0
    %s58 = scalar_select %p57, %s56, 0
    %s59 = smul.u32 2, %s58
    %p60 = scmp.eq.s32.totalorder 0, 0
    // Predicated region
    $region18: #{tpu_custom_call.1} parent=1 // pred_check
      %p61 = pneg %p60
    $region19: #{tpu_custom_call.1} parent=1 // pred_check_branch
      %63 = sbr.rel (%p61) target = $region21
    $region20: #{tpu_custom_call.1} parent=1 // pred_region
      %64 = vst [vmem:[#allocation2] sm:$0xff] 0.0
    $region21: #{tpu_custom_call.1} parent=1 // pred_fallthru
      _
    %v65 = vld [vmem:[#allocation3] sm:$0xff]
    %v66 = vld [vmem:[#allocation3 + $0x8] sm:$0xff]
    %v67 = vld [vmem:[#allocation6] sm:$0xff]
    %v68 = vld [vmem:[#allocation6 + $0x8] sm:$0xff]
    %v69 = vmul.f32 %v65, 5000.0
    %v70 = vmul.f32 %v66, 5000.0
    %v71 = vadd.f32 %v69, 1.0
    %v72 = vadd.f32 %v70, 1.0
    %v73 = vmul.f32 %v67, 5000.0
    %v74 = vmul.f32 %v68, 5000.0
    %v75 = vadd.f32 %v73, 1.0
    %v76 = vadd.f32 %v74, 1.0
    %v77 = vrcp.pop %v75
    %v78 = vmul.f32 %v71, %v77
    %v79 = vrcp.pop %v76
    %v80 = vmul.f32 %v72, %v79
    %v81 = vlog2.pop %v78
    %v82 = vmul.f32 %v81, 0.6931472
    %v83 = vlog2.pop %v80
    %v84 = vmul.f32 %v83, 0.6931472
    %v85 = vand.u32 2147483647, %v82
    %v86 = vand.u32 2147483647, %v84
    %v87 = vmul.f32 %v85, 0.117406815
    %v88 = vmul.f32 %v86, 0.117406815
    %v89 = vld [vmem:[#allocation2] sm:$0xff]
    %v90 = vadd.f32 %v87, %v88
    %v91 = vadd.f32 %v89, %v90
    %92 = vst [vmem:[#allocation2] sm:$0xff] %v91
    // Predicated region
    $region22: #{tpu_custom_call.1} parent=1 // pred_check
      %p93 = pneg %p60
    $region23: #{tpu_custom_call.1} parent=1 // pred_check_branch
      %95 = sbr.rel (%p93) target = $region25
    $region24: #{tpu_custom_call.1} parent=1 // pred_region
      %v96 = vld [vmem:[#allocation2] sm:$0xff]
      %97 = vst [vmem:[#allocation8] sm:$0xff] %v96
    $region25: #{tpu_custom_call.1} parent=1 // pred_fallthru
      _
    // Predicated region
    $region26: #{tpu_custom_call.1} parent=1 // pred_check
      _
    $region27: #{tpu_custom_call.1} parent=1 // pred_check_branch
      %99 = sbr.rel (0) target = $region29
    $region28: #{tpu_custom_call.1} parent=1 // pred_region
      %s101 = ssub.s32 128, 128
      %102 = vsyncadd [#allocation5], %s101
      %s104 = sshll.u32 [#allocation8], 4
      %s105 = int_to_ptr.vmem [resolvable:$true] %s104
      %107 = dma.vmem_to_hbm [thread:$0]  %s105, 128, %s2, [#allocation5]
    $region29: #{tpu_custom_call.1} parent=1 // pred_fallthru
      _
    // Predicated region
    $region30: #{tpu_custom_call.1} parent=1 // pred_check
      _
    $region31: #{tpu_custom_call.1} parent=1 // pred_check_branch
      %109 = sbr.rel (0) target = $region33
    $region32: #{tpu_custom_call.1} parent=1 // pred_region
      %110 = dma.done [#allocation5], 128
    $region33: #{tpu_custom_call.1} parent=1 // pred_fallthru
      _
    %111 = vsyncpa [#allocation4], 1
    %112 = vsyncpa [#allocation7], 1
    %113 = vsyncpa [#allocation5], 1

</llo_original>
